<compile_context>
chip_gen: v6e
topology: v6e:2x2x1
jax: 0.10.0
libtpu: 0.0.40
codegen_flags: <defaults>
</compile_context>

<pallas_src>
import math

import jax
import jax.numpy as jnp
import numpy as np
from jax.experimental import pallas as pl
from jax.experimental.pallas import tpu as pltpu


def _patch_transpose_kernel(x_ref, o_ref):
    """x_ref: (T, num_patches, patch_size) padded patches for T flattened (b, d)
    rows.  o_ref: (T, patch_size, num_patches) = per-row minor-dim transpose."""
    o_ref[...] = jnp.swapaxes(x_ref[...], 1, 2)


def _padded_slab_bytes(second_minor, minor, itemsize):
    """VMEM footprint of one (second_minor, minor) slab after (8,128) tiling."""
    sub_tile = 8 * max(1, 4 // itemsize)     # 8 for f32/i32, 16 for bf16, 32 for i8
    lane_tile = 128
    pad_sm = -(-second_minor // sub_tile) * sub_tile
    pad_mn = -(-minor // lane_tile) * lane_tile
    return pad_sm * pad_mn * itemsize


def padding_forward(x, patch_size, *, block_rows=None):
    B, D, L = x.shape
    num_patches = math.ceil(L / patch_size)
    l_pad = num_patches * patch_size
    pad = l_pad - L
    rows = B * D
    itemsize = jnp.dtype(x.dtype).itemsize

    x2 = x.reshape(rows, L)                                   # metadata-only
    if pad > 0:
        # Replicate-last padding; only pays an HBM pass in the ragged case.
        last = x2[:, L - 1:]
        x2 = jnp.concatenate(
            [x2, jnp.broadcast_to(last, (rows, pad))], axis=1)
    x3 = x2.reshape(rows, num_patches, patch_size)            # metadata-only view

    if block_rows is None:
        per_row = (_padded_slab_bytes(num_patches, patch_size, itemsize)
                   + _padded_slab_bytes(patch_size, num_patches, itemsize))
        budget = 4 * 1024 * 1024            # ~8 MiB with double-buffering
        block_rows = max(1, budget // max(1, per_row))
        block_rows = min(block_rows, 4096)
    block_rows = int(min(max(1, block_rows), rows))

    grid = (pl.cdiv(rows, block_rows),)

    out3 = pl.pallas_call(
        _patch_transpose_kernel,
        out_shape=jax.ShapeDtypeStruct((rows, patch_size, num_patches), x.dtype),
        grid=grid,
        in_specs=[pl.BlockSpec((block_rows, num_patches, patch_size),
                               lambda r: (r, 0, 0))],
        out_specs=pl.BlockSpec((block_rows, patch_size, num_patches),
                               lambda r: (r, 0, 0)),
        compiler_params=pltpu.CompilerParams(
            dimension_semantics=("parallel",)),
        cost_estimate=pl.CostEstimate(
            flops=0, transcendentals=0,
            bytes_accessed=int(2 * rows * l_pad * itemsize)),
    )(x3)

    # Metadata-only view back to the PyTorch output layout.
    return out3.reshape(B, D, patch_size, num_patches)


def padding_reference(x, patch_size):
    """Pure-JAX reference mirroring the PyTorch forward exactly."""
    B, D, L = x.shape
    num_patches = math.ceil(L / patch_size)
    pad = num_patches * patch_size - L
    if pad > 0:
        last = x[:, :, -1:]
        x = jnp.concatenate([x, jnp.repeat(last, pad, axis=2)], axis=2)
    x = x.reshape(B, D, num_patches, patch_size)
    return jnp.transpose(x, (0, 1, 3, 2))


if __name__ == "__main__":
    patch_size = 4
    key = jax.random.PRNGKey(0)
    k1, k2, k3 = jax.random.split(key, 3)

    # Case 1: L not divisible by patch_size (exercises replicate-last padding).
    B, D, L = 2, 4, 13
    x = jax.random.normal(k1, (B, D, L), dtype=jnp.float32)
    out = jax.block_until_ready(padding_forward(x, patch_size))
    ref = jax.block_until_ready(padding_reference(x, patch_size))
    np.testing.assert_array_equal(np.asarray(out), np.asarray(ref))

    # Case 2: exactly divisible (pure transpose path, no padding, no extra pass).
    x2 = jax.random.normal(k2, (B, D, 16), dtype=jnp.float32)
    out2 = jax.block_until_ready(padding_forward(x2, patch_size))
    ref2 = jax.block_until_ready(padding_reference(x2, patch_size))
    np.testing.assert_array_equal(np.asarray(out2), np.asarray(ref2))

    # Case 3: multi-block grid (force small row blocks to exercise the pipeline
    # and the ragged final block).
    x3 = jax.random.normal(k3, (4, 8, 13), dtype=jnp.float32)
    out3 = jax.block_until_ready(padding_forward(x3, patch_size, block_rows=8))
    ref3 = jax.block_until_ready(padding_reference(x3, patch_size))
    np.testing.assert_array_equal(np.asarray(out3), np.asarray(ref3))

    print("KERNEL_OK")
</pallas_src>

<mosaic_0001>
module attributes {stable_mosaic.version = 11 : i64} {
  func.func @_patch_transpose_kernel(%arg0: i32, %arg1: memref<8x4x4xf32, #tpu.memory_space<vmem>>, %arg2: memref<8x4x4xf32, #tpu.memory_space<vmem>>) attributes {dimension_semantics = [#tpu.dimension_semantics<parallel>], iteration_bounds = array<i64: 1>, scalar_prefetch = 0 : i64, scratch_operands = 0 : i64, tpu.core_type = #tpu.core_type<tc>, window_params = [{transform_indices = @transform_0, window_bounds = array<i64: 8, 4, 4>}, {transform_indices = @transform_1, window_bounds = array<i64: 8, 4, 4>}]} {
    %c0 = arith.constant 0 : index
    %c0_0 = arith.constant 0 : index
    %c0_1 = arith.constant 0 : index
    %0 = vector.load %arg1[%c0, %c0_0, %c0_1] : memref<8x4x4xf32, #tpu.memory_space<vmem>>, vector<8x4x4xf32>
    %1 = tpu.transpose %0, [0, 2, 1] : vector<8x4x4xf32> -> vector<8x4x4xf32>
    %c0_2 = arith.constant 0 : index
    %c0_3 = arith.constant 0 : index
    %c0_4 = arith.constant 0 : index
    %2 = vector.load %arg2[%c0_2, %c0_3, %c0_4] : memref<8x4x4xf32, #tpu.memory_space<vmem>>, vector<8x4x4xf32>
    tpu.vector_store %arg2[%c0_2, %c0_3, %c0_4], %1 {strides = array<i32>} : memref<8x4x4xf32, #tpu.memory_space<vmem>>, vector<8x4x4xf32>,
    return
  }
  func.func @transform_0(%arg0: i32) -> (i32, i32, i32) {
    %c0_i32 = arith.constant 0 : i32
    %c0_i32_0 = arith.constant 0 : i32
    %c0_i32_1 = arith.constant 0 : i32
    return %arg0, %c0_i32, %c0_i32_0 : i32, i32, i32
  }
  func.func @transform_1(%arg0: i32) -> (i32, i32, i32) {
    %c0_i32 = arith.constant 0 : i32
    %c0_i32_0 = arith.constant 0 : i32
    %c0_i32_1 = arith.constant 0 : i32
    return %arg0, %c0_i32, %c0_i32_0 : i32, i32, i32
  }
}

</mosaic_0001>

<llo_original>
// kernel: tpu_custom_call.1
$region0: #{tpu_custom_call.1}
  #allocation0 [shape = 'u32[]', space=smem, size = 0x4, offset = 0x4, fixed_abs, tag = 'smem constant byte address 0x4 - core index']
  #allocation1 [shape = 'u32[144,128]{1,0:T(1,128)}', space=vmem, size = 0x12000, scoped, tag = 'internal scratch']
  %s0 = inlined_call_operand.vmem [shape: f32[8,4,4], index: 0, kind: input, shape index: {}]
  %s1 = inlined_call_operand.vmem [shape: f32[8,4,4], index: 1, kind: output, shape index: {}]
  %s2 = sld [smem:[#allocation0]]
  $region14: #{tpu_custom_call.1} parent=0
    _
  %s4 = ssub.s32 1, %s2
  %s5 = scalar_select 0, %s4, %s2
  // Predicated region
  $region2: #{tpu_custom_call.1} parent=0 // pred_check
    _
  $region3: #{tpu_custom_call.1} parent=0 // pred_check_branch
    %7 = sbr.rel (0) target = $region5
  $region4: #{tpu_custom_call.1} parent=0 // pred_region
    _
  $region5: #{tpu_custom_call.1} parent=0 // pred_fallthru
    _
  %v8 = vld [vmem:[%s0] sm:$0xf]
  %v9 = vld [vmem:[%s0 + $0x4] sm:$0xf]
  %v10 = vld [vmem:[%s0 + $0x8] sm:$0xf]
  %v11 = vld [vmem:[%s0 + $0xc] sm:$0xf]
  %v12 = vld [vmem:[%s0 + $0x10] sm:$0xf]
  %v13 = vld [vmem:[%s0 + $0x14] sm:$0xf]
  %v14 = vld [vmem:[%s0 + $0x18] sm:$0xf]
  %v15 = vld [vmem:[%s0 + $0x1c] sm:$0xf]
  %16 = vxpose.xlu0.b32.start [1/16] %v8, 128
  %17 = vxpose.xlu0.b32.cont [2/16] 0.0, 128
  %18 = vxpose.xlu0.b32.cont [3/16] 0.0, 128
  %19 = vxpose.xlu0.b32.cont [4/16] 0.0, 128
  %20 = vxpose.xlu0.b32.cont [5/16] 0.0, 128
  %21 = vxpose.xlu0.b32.cont [6/16] 0.0, 128
  %22 = vxpose.xlu0.b32.cont [7/16] 0.0, 128
  %23 = vxpose.xlu0.b32.cont [8/16] 0.0, 128
  %24 = vxpose.xlu0.b32.cont [9/16] 0.0, 128
  %25 = vxpose.xlu0.b32.cont [10/16] 0.0, 128
  %26 = vxpose.xlu0.b32.cont [11/16] 0.0, 128
  %27 = vxpose.xlu0.b32.cont [12/16] 0.0, 128
  %28 = vxpose.xlu0.b32.cont [13/16] 0.0, 128
  %29 = vxpose.xlu0.b32.cont [14/16] 0.0, 128
  %30 = vxpose.xlu0.b32.cont [15/16] 0.0, 128
  %31 = vxpose.xlu0.b32.end [16/16] 0.0, 128
  %v32 = vpop.trf.xlu0
  %v33 = vpop.trf.xlu0
  %v34 = vpop.trf.xlu0
  %v35 = vpop.trf.xlu0
  %v36 = vpop.trf.xlu0
  %v37 = vpop.trf.xlu0
  %v38 = vpop.trf.xlu0
  %v39 = vpop.trf.xlu0
  %v40 = vpop.trf.xlu0
  %v41 = vpop.trf.xlu0
  %v42 = vpop.trf.xlu0
  %v43 = vpop.trf.xlu0
  %v44 = vpop.trf.xlu0
  %v45 = vpop.trf.xlu0
  %v46 = vpop.trf.xlu0
  %v47 = vpop.trf.xlu0
  %48 = vxpose.xlu0.b32.start [1/16] %v9, 128
  %49 = vxpose.xlu0.b32.cont [2/16] 0.0, 128
  %50 = vxpose.xlu0.b32.cont [3/16] 0.0, 128
  %51 = vxpose.xlu0.b32.cont [4/16] 0.0, 128
  %52 = vxpose.xlu0.b32.cont [5/16] 0.0, 128
  %53 = vxpose.xlu0.b32.cont [6/16] 0.0, 128
  %54 = vxpose.xlu0.b32.cont [7/16] 0.0, 128
  %55 = vxpose.xlu0.b32.cont [8/16] 0.0, 128
  %56 = vxpose.xlu0.b32.cont [9/16] 0.0, 128
  %57 = vxpose.xlu0.b32.cont [10/16] 0.0, 128
  %58 = vxpose.xlu0.b32.cont [11/16] 0.0, 128
  %59 = vxpose.xlu0.b32.cont [12/16] 0.0, 128
  %60 = vxpose.xlu0.b32.cont [13/16] 0.0, 128
  %61 = vxpose.xlu0.b32.cont [14/16] 0.0, 128
  %62 = vxpose.xlu0.b32.cont [15/16] 0.0, 128
  %63 = vxpose.xlu0.b32.end [16/16] 0.0, 128
  %v64 = vpop.trf.xlu0
  %v65 = vpop.trf.xlu0
  %v66 = vpop.trf.xlu0
  %v67 = vpop.trf.xlu0
  %v68 = vpop.trf.xlu0
  %v69 = vpop.trf.xlu0
  %v70 = vpop.trf.xlu0
  %v71 = vpop.trf.xlu0
  %v72 = vpop.trf.xlu0
  %v73 = vpop.trf.xlu0
  %v74 = vpop.trf.xlu0
  %v75 = vpop.trf.xlu0
  %v76 = vpop.trf.xlu0
  %v77 = vpop.trf.xlu0
  %v78 = vpop.trf.xlu0
  %v79 = vpop.trf.xlu0
  %80 = vxpose.xlu0.b32.start [1/16] %v10, 128
  %81 = vxpose.xlu0.b32.cont [2/16] 0.0, 128
  %82 = vxpose.xlu0.b32.cont [3/16] 0.0, 128
  %83 = vxpose.xlu0.b32.cont [4/16] 0.0, 128
  %84 = vxpose.xlu0.b32.cont [5/16] 0.0, 128
  %85 = vxpose.xlu0.b32.cont [6/16] 0.0, 128
  %86 = vxpose.xlu0.b32.cont [7/16] 0.0, 128
  %87 = vxpose.xlu0.b32.cont [8/16] 0.0, 128
  %88 = vxpose.xlu0.b32.cont [9/16] 0.0, 128
  %89 = vxpose.xlu0.b32.cont [10/16] 0.0, 128
  %90 = vxpose.xlu0.b32.cont [11/16] 0.0, 128
  %91 = vxpose.xlu0.b32.cont [12/16] 0.0, 128
  %92 = vxpose.xlu0.b32.cont [13/16] 0.0, 128
  %93 = vxpose.xlu0.b32.cont [14/16] 0.0, 128
  %94 = vxpose.xlu0.b32.cont [15/16] 0.0, 128
  %95 = vxpose.xlu0.b32.end [16/16] 0.0, 128
  %v96 = vpop.trf.xlu0
  %v97 = vpop.trf.xlu0
  %v98 = vpop.trf.xlu0
  %v99 = vpop.trf.xlu0
  %v100 = vpop.trf.xlu0
  %v101 = vpop.trf.xlu0
  %v102 = vpop.trf.xlu0
  %v103 = vpop.trf.xlu0
  %v104 = vpop.trf.xlu0
  %v105 = vpop.trf.xlu0
  %v106 = vpop.trf.xlu0
  %v107 = vpop.trf.xlu0
  %v108 = vpop.trf.xlu0
  %v109 = vpop.trf.xlu0
  %v110 = vpop.trf.xlu0
  %v111 = vpop.trf.xlu0
  %112 = vxpose.xlu0.b32.start [1/16] %v11, 128
  %113 = vxpose.xlu0.b32.cont [2/16] 0.0, 128
  %114 = vxpose.xlu0.b32.cont [3/16] 0.0, 128
  %115 = vxpose.xlu0.b32.cont [4/16] 0.0, 128
  %116 = vxpose.xlu0.b32.cont [5/16] 0.0, 128
  %117 = vxpose.xlu0.b32.cont [6/16] 0.0, 128
  %118 = vxpose.xlu0.b32.cont [7/16] 0.0, 128
  %119 = vxpose.xlu0.b32.cont [8/16] 0.0, 128
  %120 = vxpose.xlu0.b32.cont [9/16] 0.0, 128
  %121 = vxpose.xlu0.b32.cont [10/16] 0.0, 128
  %122 = vxpose.xlu0.b32.cont [11/16] 0.0, 128
  %123 = vxpose.xlu0.b32.cont [12/16] 0.0, 128
  %124 = vxpose.xlu0.b32.cont [13/16] 0.0, 128
  %125 = vxpose.xlu0.b32.cont [14/16] 0.0, 128
  %126 = vxpose.xlu0.b32.cont [15/16] 0.0, 128
  %127 = vxpose.xlu0.b32.end [16/16] 0.0, 128
  %v128 = vpop.trf.xlu0
  %v129 = vpop.trf.xlu0
  %v130 = vpop.trf.xlu0
  %v131 = vpop.trf.xlu0
  %v132 = vpop.trf.xlu0
  %v133 = vpop.trf.xlu0
  %v134 = vpop.trf.xlu0
  %v135 = vpop.trf.xlu0
  %v136 = vpop.trf.xlu0
  %v137 = vpop.trf.xlu0
  %v138 = vpop.trf.xlu0
  %v139 = vpop.trf.xlu0
  %v140 = vpop.trf.xlu0
  %v141 = vpop.trf.xlu0
  %v142 = vpop.trf.xlu0
  %v143 = vpop.trf.xlu0
  %144 = vxpose.xlu0.b32.start [1/16] %v12, 128
  %145 = vxpose.xlu0.b32.cont [2/16] 0.0, 128
  %146 = vxpose.xlu0.b32.cont [3/16] 0.0, 128
  %147 = vxpose.xlu0.b32.cont [4/16] 0.0, 128
  %148 = vxpose.xlu0.b32.cont [5/16] 0.0, 128
  %149 = vxpose.xlu0.b32.cont [6/16] 0.0, 128
  %150 = vxpose.xlu0.b32.cont [7/16] 0.0, 128
  %151 = vxpose.xlu0.b32.cont [8/16] 0.0, 128
  %152 = vxpose.xlu0.b32.cont [9/16] 0.0, 128
  %153 = vxpose.xlu0.b32.cont [10/16] 0.0, 128
  %154 = vxpose.xlu0.b32.cont [11/16] 0.0, 128
  %155 = vxpose.xlu0.b32.cont [12/16] 0.0, 128
  %156 = vxpose.xlu0.b32.cont [13/16] 0.0, 128
  %157 = vxpose.xlu0.b32.cont [14/16] 0.0, 128
  %158 = vxpose.xlu0.b32.cont [15/16] 0.0, 128
  %159 = vxpose.xlu0.b32.end [16/16] 0.0, 128
  %v160 = vpop.trf.xlu0
  %v161 = vpop.trf.xlu0
  %v162 = vpop.trf.xlu0
  %v163 = vpop.trf.xlu0
  %v164 = vpop.trf.xlu0
  %v165 = vpop.trf.xlu0
  %v166 = vpop.trf.xlu0
  %v167 = vpop.trf.xlu0
  %v168 = vpop.trf.xlu0
  %v169 = vpop.trf.xlu0
  %v170 = vpop.trf.xlu0
  %v171 = vpop.trf.xlu0
  %v172 = vpop.trf.xlu0
  %v173 = vpop.trf.xlu0
  %v174 = vpop.trf.xlu0
  %v175 = vpop.trf.xlu0
  %176 = vxpose.xlu0.b32.start [1/16] %v13, 128
  %177 = vxpose.xlu0.b32.cont [2/16] 0.0, 128
  %178 = vxpose.xlu0.b32.cont [3/16] 0.0, 128
  %179 = vxpose.xlu0.b32.cont [4/16] 0.0, 128
  %180 = vxpose.xlu0.b32.cont [5/16] 0.0, 128
  %181 = vxpose.xlu0.b32.cont [6/16] 0.0, 128
  %182 = vxpose.xlu0.b32.cont [7/16] 0.0, 128
  %183 = vxpose.xlu0.b32.cont [8/16] 0.0, 128
  %184 = vxpose.xlu0.b32.cont [9/16] 0.0, 128
  %185 = vxpose.xlu0.b32.cont [10/16] 0.0, 128
  %186 = vxpose.xlu0.b32.cont [11/16] 0.0, 128
  %187 = vxpose.xlu0.b32.cont [12/16] 0.0, 128
  %188 = vxpose.xlu0.b32.cont [13/16] 0.0, 128
  %189 = vxpose.xlu0.b32.cont [14/16] 0.0, 128
  %190 = vxpose.xlu0.b32.cont [15/16] 0.0, 128
  %191 = vxpose.xlu0.b32.end [16/16] 0.0, 128
  %v192 = vpop.trf.xlu0
  %v193 = vpop.trf.xlu0
  %v194 = vpop.trf.xlu0
  %v195 = vpop.trf.xlu0
  %v196 = vpop.trf.xlu0
  %v197 = vpop.trf.xlu0
  %v198 = vpop.trf.xlu0
  %v199 = vpop.trf.xlu0
  %v200 = vpop.trf.xlu0
  %v201 = vpop.trf.xlu0
  %v202 = vpop.trf.xlu0
  %v203 = vpop.trf.xlu0
  %v204 = vpop.trf.xlu0
  %v205 = vpop.trf.xlu0
  %v206 = vpop.trf.xlu0
  %v207 = vpop.trf.xlu0
  %208 = vxpose.xlu0.b32.start [1/16] %v14, 128
  %209 = vxpose.xlu0.b32.cont [2/16] 0.0, 128
  %210 = vxpose.xlu0.b32.cont [3/16] 0.0, 128
  %211 = vxpose.xlu0.b32.cont [4/16] 0.0, 128
  %212 = vxpose.xlu0.b32.cont [5/16] 0.0, 128
  %213 = vxpose.xlu0.b32.cont [6/16] 0.0, 128
  %214 = vxpose.xlu0.b32.cont [7/16] 0.0, 128
  %215 = vxpose.xlu0.b32.cont [8/16] 0.0, 128
  %216 = vxpose.xlu0.b32.cont [9/16] 0.0, 128
  %217 = vxpose.xlu0.b32.cont [10/16] 0.0, 128
  %218 = vxpose.xlu0.b32.cont [11/16] 0.0, 128
  %219 = vxpose.xlu0.b32.cont [12/16] 0.0, 128
  %220 = vxpose.xlu0.b32.cont [13/16] 0.0, 128
  %221 = vxpose.xlu0.b32.cont [14/16] 0.0, 128
  %222 = vxpose.xlu0.b32.cont [15/16] 0.0, 128
  %223 = vxpose.xlu0.b32.end [16/16] 0.0, 128
  %v224 = vpop.trf.xlu0
  %v225 = vpop.trf.xlu0
  %v226 = vpop.trf.xlu0
  %v227 = vpop.trf.xlu0
  %v228 = vpop.trf.xlu0
  %v229 = vpop.trf.xlu0
  %v230 = vpop.trf.xlu0
  %v231 = vpop.trf.xlu0
  %v232 = vpop.trf.xlu0
  %v233 = vpop.trf.xlu0
  %v234 = vpop.trf.xlu0
  %v235 = vpop.trf.xlu0
  %v236 = vpop.trf.xlu0
  %v237 = vpop.trf.xlu0
  %v238 = vpop.trf.xlu0
  %v239 = vpop.trf.xlu0
  %240 = vxpose.xlu0.b32.start [1/16] %v15, 128
  %241 = vxpose.xlu0.b32.cont [2/16] 0.0, 128
  %242 = vxpose.xlu0.b32.cont [3/16] 0.0, 128
  %243 = vxpose.xlu0.b32.cont [4/16] 0.0, 128
  %244 = vxpose.xlu0.b32.cont [5/16] 0.0, 128
  %245 = vxpose.xlu0.b32.cont [6/16] 0.0, 128
  %246 = vxpose.xlu0.b32.cont [7/16] 0.0, 128
  %247 = vxpose.xlu0.b32.cont [8/16] 0.0, 128
  %248 = vxpose.xlu0.b32.cont [9/16] 0.0, 128
  %249 = vxpose.xlu0.b32.cont [10/16] 0.0, 128
  %250 = vxpose.xlu0.b32.cont [11/16] 0.0, 128
  %251 = vxpose.xlu0.b32.cont [12/16] 0.0, 128
  %252 = vxpose.xlu0.b32.cont [13/16] 0.0, 128
  %253 = vxpose.xlu0.b32.cont [14/16] 0.0, 128
  %254 = vxpose.xlu0.b32.cont [15/16] 0.0, 128
  %255 = vxpose.xlu0.b32.end [16/16] 0.0, 128
  %v256 = vpop.trf.xlu0
  %v257 = vpop.trf.xlu0
  %v258 = vpop.trf.xlu0
  %v259 = vpop.trf.xlu0
  %v260 = vpop.trf.xlu0
  %v261 = vpop.trf.xlu0
  %v262 = vpop.trf.xlu0
  %v263 = vpop.trf.xlu0
  %v264 = vpop.trf.xlu0
  %v265 = vpop.trf.xlu0
  %v266 = vpop.trf.xlu0
  %v267 = vpop.trf.xlu0
  %v268 = vpop.trf.xlu0
  %v269 = vpop.trf.xlu0
  %v270 = vpop.trf.xlu0
  %v271 = vpop.trf.xlu0
  %vm272 = vcmask 27648
  %273 = vst.msk [vmem:[%s1] sm:$0xf] %vm272, %v32
  %274 = vst.msk [vmem:[%s1 + $0x4] sm:$0xf] %vm272, %v64
  %275 = vst.msk [vmem:[%s1 + $0x8] sm:$0xf] %vm272, %v96
  %276 = vst.msk [vmem:[%s1 + $0xc] sm:$0xf] %vm272, %v128
  %277 = vst.msk [vmem:[%s1 + $0x10] sm:$0xf] %vm272, %v160
  %278 = vst.msk [vmem:[%s1 + $0x14] sm:$0xf] %vm272, %v192
  %279 = vst.msk [vmem:[%s1 + $0x18] sm:$0xf] %vm272, %v224
  %280 = vst.msk [vmem:[%s1 + $0x1c] sm:$0xf] %vm272, %v256
  // Predicated region
  $region6: #{tpu_custom_call.1} parent=0 // pred_check
    _
  $region7: #{tpu_custom_call.1} parent=0 // pred_check_branch
    %282 = sbr.rel (0) target = $region9
  $region8: #{tpu_custom_call.1} parent=0 // pred_region
    _
  $region9: #{tpu_custom_call.1} parent=0 // pred_fallthru
    _
  // Predicated region
  $region10: #{tpu_custom_call.1} parent=0 // pred_check
    _
  $region11: #{tpu_custom_call.1} parent=0 // pred_check_branch
    %284 = sbr.rel (0) target = $region13
  $region12: #{tpu_custom_call.1} parent=0 // pred_region
    _
  $region13: #{tpu_custom_call.1} parent=0 // pred_fallthru
    _

</llo_original>
